<compile_context>
chip_gen: v6e
topology: v6e:2x2x1
jax: 0.10.0
libtpu: 0.0.40
codegen_flags: <defaults>
</compile_context>

<pallas_src>
import functools
import math
from dataclasses import dataclass
from typing import List, Optional, Tuple

import numpy as np
import jax
import jax.numpy as jnp
from jax import lax
from jax.experimental import pallas as pl
from jax.experimental.pallas import tpu as pltpu


# ----------------------------- config ---------------------------------------

@dataclass
class CoconutConfig:
    max_latent_iterations: int = 3
    enable_kv_cache_reuse: bool = True
    pause_token_id: int = -100
    latent_token_id: int = -105
    think_start_id: int = -101
    think_end_id: int = -102
    hidden_fusion_method: str = "concat"


HIDDEN = 32     # hidden size of synthetic base model
INTER = 64      # MLP intermediate size
VOCAB = 64      # vocab size of synthetic base model
LANE = 128      # lane-padded width for Q/K/V and the packed output slab
NEG_INF = -1e30

assert VOCAB + HIDDEN <= LANE, "packed head slab must fit in 128 lanes"


def _round_up8(n: int) -> int:
    return ((n + 7) // 8) * 8


# ----------------------------- Pallas kernel --------------------------------

def _layernorm(x, g, b, eps=1e-5):
    mu = jnp.mean(x, axis=-1, keepdims=True)
    var = jnp.mean((x - mu) ** 2, axis=-1, keepdims=True)
    return (x - mu) * lax.rsqrt(var + eps) * g + b


def _decoder_block_kernel(x_ref, wqkv_ref, wo_ref, w1_ref, w2_ref, whead_ref,
                          ln_ref, out_ref, *, s_pad):
    """One batch element per grid program: x_ref is [s_pad, H].

    Causality is a plain row>=col compare on a [s_pad, s_pad] score tile.
    All matmuls take bf16 operands with fp32 MXU accumulation; all elementwise
    math (LN / softmax / GELU) stays fp32.  Attention scale is pre-folded into
    the Q weight columns.  The packed head weight is [wlm | I_H | 0] so logits
    AND the final hidden state are emitted by a single 128-lane-wide
    (unmasked) store."""
    f32 = jnp.float32
    bf16 = jnp.bfloat16

    x = x_ref[...]                                    # [s_pad, H] f32

    # packed LayerNorm params: rows 0..5 = ln1g, ln1b, ln2g, ln2b, lnfg, lnfb
    ln1g = ln_ref[0:1, :]
    ln1b = ln_ref[1:2, :]
    ln2g = ln_ref[2:3, :]
    ln2b = ln_ref[3:4, :]
    lnfg = ln_ref[4:5, :]
    lnfb = ln_ref[5:6, :]

    # --- causal self-attention (single head, fused lane-padded QKV) ---
    h = _layernorm(x, ln1g, ln1b)
    qkv = jnp.dot(h.astype(bf16), wqkv_ref[...],
                  preferred_element_type=f32)         # [s_pad, 3*LANE]
    qkv_b = qkv.astype(bf16)                          # ONE cast for q, k, v
    q = qkv_b[:, 0:LANE]                              # lane-aligned slices
    k = qkv_b[:, LANE:2 * LANE]
    v = qkv_b[:, 2 * LANE:3 * LANE]

    # scale already folded into the Q weight columns
    scores = lax.dot_general(q, k, (((1,), (1,)), ((), ())),
                             preferred_element_type=f32)   # [s_pad, s_pad]

    row = lax.broadcasted_iota(jnp.int32, (s_pad, s_pad), 0)
    col = lax.broadcasted_iota(jnp.int32, (s_pad, s_pad), 1)
    scores = jnp.where(row >= col, scores, NEG_INF)

    scores = scores - jnp.max(scores, axis=-1, keepdims=True)
    p = jnp.exp(scores)
    p = p * pl.reciprocal(jnp.sum(p, axis=-1, keepdims=True), approx=True)

    attn = jnp.dot(p.astype(bf16), v, preferred_element_type=f32)  # [s_pad, LANE]
    x = x + jnp.dot(attn.astype(bf16), wo_ref[...],
                    preferred_element_type=f32)                    # [s_pad, H]

    # --- MLP ---
    h2 = _layernorm(x, ln2g, ln2b)
    up = jax.nn.gelu(
        jnp.dot(h2.astype(bf16), w1_ref[...], preferred_element_type=f32),
        approximate=True)
    x = x + jnp.dot(up.astype(bf16), w2_ref[...], preferred_element_type=f32)

    # --- final norm + packed head (logits | hidden-copy | zeros) ---
    hf = _layernorm(x, lnfg, lnfb)
    out_ref[...] = jnp.dot(hf.astype(bf16), whead_ref[...],
                           preferred_element_type=f32)             # [s_pad, 128]


def make_base_forward(batch: int, s_pad: int):
    """Build the fixed-shape, jit-cached base-model forward for (batch, s_pad).

    Returns fwd(inputs_embeds_padded [B, S_pad, H], weights) ->
        (logits [B, S_pad, VOCAB] f32, last_hidden [B, S_pad, HIDDEN] f32)."""
    kernel = functools.partial(_decoder_block_kernel, s_pad=s_pad)

    grid_spec = pltpu.PrefetchScalarGridSpec(
        num_scalar_prefetch=0,
        grid=(batch,),
        in_specs=[
            pl.BlockSpec((s_pad, HIDDEN), lambda b: (b, 0)),        # x (per-batch)
            pl.BlockSpec((HIDDEN, 3 * LANE), lambda b: (0, 0)),     # wqkv
            pl.BlockSpec((LANE, HIDDEN), lambda b: (0, 0)),         # wo (row-padded)
            pl.BlockSpec((HIDDEN, INTER), lambda b: (0, 0)),        # w1
            pl.BlockSpec((INTER, HIDDEN), lambda b: (0, 0)),        # w2
            pl.BlockSpec((HIDDEN, LANE), lambda b: (0, 0)),         # packed head
            pl.BlockSpec((8, HIDDEN), lambda b: (0, 0)),            # packed LN params
        ],
        out_specs=pl.BlockSpec((s_pad, LANE), lambda b: (b, 0)),
    )

    call = pl.pallas_call(
        kernel,
        out_shape=jax.ShapeDtypeStruct((batch * s_pad, LANE), jnp.float32),
        grid_spec=grid_spec,
        compiler_params=pltpu.CompilerParams(
            dimension_semantics=("parallel",),      # megacore: split batch
            vmem_limit_bytes=32 << 20,
        ),
    )

    @jax.jit
    def fwd(inputs_embeds_padded, weights):
        x_flat = inputs_embeds_padded.reshape(batch * s_pad, HIDDEN)
        slab = call(x_flat, *weights)                          # [B*S_pad, 128]
        slab = slab.reshape(batch, s_pad, LANE)
        logits = slab[..., :VOCAB]
        hidden = slab[..., VOCAB:VOCAB + HIDDEN]
        return logits, hidden

    return fwd


# ----------------------------- model ----------------------------------------

class KimiCoconutModelPallas:
    """JAX/Pallas port of KimiCoconutModel's forward semantics."""

    def __init__(self, coconut_config: Optional[CoconutConfig] = None,
                 key: Optional[jax.Array] = None):
        self.config = coconut_config or CoconutConfig()
        self.hidden_size = HIDDEN
        key = key if key is not None else jax.random.PRNGKey(0)
        ks = jax.random.split(key, 9)
        std = 0.02
        f32 = jnp.float32
        bf16 = jnp.bfloat16

        emb = jax.random.normal(ks[0], (VOCAB, HIDDEN), f32) * std
        wq = jax.random.normal(ks[1], (HIDDEN, HIDDEN), f32) * std
        wk = jax.random.normal(ks[2], (HIDDEN, HIDDEN), f32) * std
        wv = jax.random.normal(ks[3], (HIDDEN, HIDDEN), f32) * std
        wo = jax.random.normal(ks[4], (HIDDEN, HIDDEN), f32) * std
        w1 = jax.random.normal(ks[5], (HIDDEN, INTER), f32) * std
        w2 = jax.random.normal(ks[6], (INTER, HIDDEN), f32) * std
        wlm = jax.random.normal(ks[7], (HIDDEN, VOCAB), f32) * std

        self.params = {"emb": emb}

        # --- fused / lane-padded kernel weights (built once, bf16 operands) ---
        # Fold the 1/sqrt(H) attention scale into the Q columns (host-side,
        # zero runtime cost) and lane-pad each of Q/K/V to 128 columns so the
        # in-kernel slices are vreg-lane aligned.
        scale = 1.0 / math.sqrt(HIDDEN)
        pad_cols = jnp.zeros((HIDDEN, LANE - HIDDEN), f32)
        wqkv = jnp.concatenate(
            [wq * scale, pad_cols, wk, pad_cols, wv, pad_cols],
            axis=1).astype(bf16)                               # [H, 3*128]

        # Output projection row-padded to 128 (padded attn lanes are zero).
        wo_pad = jnp.concatenate(
            [wo, jnp.zeros((LANE - HIDDEN, HIDDEN), f32)], axis=0).astype(bf16)

        # Packed head: lanes [0:V) = LM head, [V:V+H) = identity (copies the
        # post-final-LN hidden state out of the same matmul), rest zero.
        whead = jnp.concatenate(
            [wlm, jnp.eye(HIDDEN, dtype=f32),
             jnp.zeros((HIDDEN, LANE - VOCAB - HIDDEN), f32)],
            axis=1).astype(bf16)                               # [H, 128]

        # Packed LayerNorm params: one (8, H) DMA instead of six (1, H) DMAs.
        # rows: ln1g, ln1b, ln2g, ln2b, lnfg, lnfb, 0, 0
        ln_pack = jnp.concatenate(
            [jnp.ones((1, HIDDEN), f32), jnp.zeros((1, HIDDEN), f32),
             jnp.ones((1, HIDDEN), f32), jnp.zeros((1, HIDDEN), f32),
             jnp.ones((1, HIDDEN), f32), jnp.zeros((1, HIDDEN), f32),
             jnp.zeros((2, HIDDEN), f32)], axis=0)             # [8, H]

        self.kernel_weights = (
            wqkv, wo_pad, w1.astype(bf16), w2.astype(bf16), whead, ln_pack)

        if self.config.hidden_fusion_method == "weighted":
            self.fusion_weights = jnp.ones(
                (self.config.max_latent_iterations,), f32)

        self._fwd_cache = {}

    # --- compiled-forward cache (one compile per (B, S_pad)) ---

    def _get_forward(self, batch: int, s_pad: int):
        key = (batch, s_pad)
        if key not in self._fwd_cache:
            self._fwd_cache[key] = make_base_forward(batch, s_pad)
        return self._fwd_cache[key]

    # --- latent-token bookkeeping (host-side, concrete positions) ---

    def _find_latent_positions(self, input_ids: np.ndarray) -> List[Tuple[int, int]]:
        positions = []
        pause_mask = input_ids == self.config.pause_token_id
        if pause_mask.any():
            positions.extend([(int(b), int(s)) for b, s in np.argwhere(pause_mask)])
        latent_mask = input_ids == self.config.latent_token_id
        if latent_mask.any():
            positions.extend([(int(b), int(s)) for b, s in np.argwhere(latent_mask)])
        return sorted(positions, key=lambda x: (x[0], x[1]))

    def _group_by_batch(self, positions, batch_size):
        batch_positions = [[] for _ in range(batch_size)]
        for batch_idx, seq_idx in positions:
            batch_positions[batch_idx].append((batch_idx, seq_idx))
        return batch_positions

    def _embed_padded(self, input_ids: np.ndarray, s_pad: int) -> jnp.ndarray:
        # special (negative) token ids get embedding row 0 — their embeddings
        # are only consumed after COCONUT has overwritten them anyway.
        B, S = input_ids.shape
        safe_ids = np.where(input_ids < 0, 0, input_ids).astype(np.int32)
        emb = self.params["emb"][jnp.asarray(safe_ids)]              # [B, S, H]
        if s_pad > S:
            emb = jnp.pad(emb, ((0, 0), (0, s_pad - S), (0, 0)))
        return emb

    # --- forward ---

    def forward(self, input_ids: np.ndarray,
                attention_mask: Optional[np.ndarray] = None,
                position_ids: Optional[np.ndarray] = None):
        input_ids = np.asarray(input_ids)
        B, S = input_ids.shape
        latent_positions = self._find_latent_positions(input_ids)
        if len(latent_positions) == 0:
            s_pad = _round_up8(S)
            fwd = self._get_forward(B, s_pad)
            logits, hidden = fwd(self._embed_padded(input_ids, s_pad),
                                 self.kernel_weights)
            return {"logits": logits[:, :S], "hidden_states": [hidden[:, :S]]}
        return self._coconut_forward(input_ids, latent_positions)

    def _coconut_forward(self, input_ids: np.ndarray, latent_positions):
        batch_size, seq_len = input_ids.shape
        s_pad = _round_up8(seq_len)
        fwd = self._get_forward(batch_size, s_pad)      # ONE compile, reused
        inputs_embeds = self._embed_padded(input_ids, s_pad)   # [B, S_pad, H]
        batch_latent_positions = self._group_by_batch(latent_positions, batch_size)

        all_logits, all_hidden = [], []
        compute_start = 0
        max_iters = max(len(pos) for pos in batch_latent_positions)

        for latent_idx in range(max_iters):
            compute_end = seq_len
            for batch_idx, positions in enumerate(batch_latent_positions):
                if latent_idx < len(positions):
                    compute_end = min(compute_end, positions[latent_idx][1])

            # Fixed-shape full-sequence recompute: attention is causal and
            # prefix embeddings never change after their chunk was computed,
            # so rows [compute_start:compute_end) are numerically identical
            # to the reference's KV-cached chunk.
            # TODO(synk): incremental KV-reuse via scalar-prefetched
            # compute_start/compute_end at real sequence lengths.
            logits_full, hidden_full = fwd(inputs_embeds, self.kernel_weights)
            all_logits.append(logits_full[:, compute_start:compute_end])
            all_hidden.append(hidden_full[:, compute_start:compute_end])

            # hidden-state fusion back into the (not yet consumed) latent slot
            inputs_embeds = self._process_latent_hidden_states(
                inputs_embeds, hidden_full, batch_latent_positions,
                latent_idx, compute_end)

            compute_start = compute_end

        final_logits = jnp.concatenate(all_logits, axis=1)
        return {"logits": final_logits, "hidden_states": all_hidden}

    def _process_latent_hidden_states(self, inputs_embeds, hidden_full,
                                      batch_positions, latent_idx, position):
        """Vectorized fusion: one batched scatter instead of per-element sets."""
        b_idx, s_idx = [], []
        for batch_idx, positions in enumerate(batch_positions):
            if latent_idx < len(positions):
                _, seq_idx = positions[latent_idx]
                if seq_idx == position:
                    b_idx.append(batch_idx)
                    s_idx.append(seq_idx)
        if not b_idx:
            return inputs_embeds

        b_arr = jnp.asarray(b_idx, jnp.int32)
        s_arr = jnp.asarray(s_idx, jnp.int32)
        # last row of the just-computed chunk == position compute_end - 1
        h_last = hidden_full[b_arr, position - 1]                 # [n, H]

        method = self.config.hidden_fusion_method
        if method == "concat":
            new_vals = h_last
        elif method == "add":
            new_vals = inputs_embeds[b_arr, s_arr] + h_last
        elif method == "weighted":
            w = (self.fusion_weights[latent_idx]
                 if latent_idx < self.fusion_weights.shape[0] else 1.0)
            new_vals = inputs_embeds[b_arr, s_arr] * (1 - w) + h_last * w
        else:
            new_vals = h_last
        return inputs_embeds.at[b_arr, s_arr].set(new_vals)

    # TODO(synk): generate_with_coconut depends on an external tokenizer and an
    # autoregressive sampling loop of the HF base model; not a kernel concern.


# ----------------------------- demo -----------------------------------------

if __name__ == "__main__":
    cfg = CoconutConfig()
    model = KimiCoconutModelPallas(cfg, key=jax.random.PRNGKey(0))

    B, S = 2, 8
    key_ids = jax.random.PRNGKey(0)
    input_ids = np.array(
        jax.random.randint(key_ids, (B, S), minval=3, maxval=VOCAB),
        dtype=np.int64)
    # insert COCONUT special tokens (concrete, host-visible positions)
    input_ids[0, 3] = cfg.latent_token_id
    input_ids[0, 6] = cfg.latent_token_id
    input_ids[1, 4] = cfg.pause_token_id

    out = model.forward(input_ids)
    logits = jax.block_until_ready(out["logits"])

    # logits cover [0 : last compute_end) = [0 : 6) here, matching the reference
    assert logits.shape == (B, 6, VOCAB), logits.shape
    assert bool(jnp.all(jnp.isfinite(logits)))

    # also exercise the no-latent fast path (reuses the same compiled kernel)
    plain_ids = np.abs(input_ids) % VOCAB
    out2 = model.forward(plain_ids)
    logits2 = jax.block_until_ready(out2["logits"])
    assert logits2.shape == (B, S, VOCAB)
    assert bool(jnp.all(jnp.isfinite(logits2)))

    print("KERNEL_OK")
</pallas_src>

<mosaic_0001>
module attributes {stable_mosaic.version = 11 : i64} {
  func.func @_decoder_block_kernel(%arg0: i32, %arg1: memref<8x32xf32, #tpu.memory_space<vmem>>, %arg2: memref<32x384xbf16, #tpu.memory_space<vmem>>, %arg3: memref<128x32xbf16, #tpu.memory_space<vmem>>, %arg4: memref<32x64xbf16, #tpu.memory_space<vmem>>, %arg5: memref<64x32xbf16, #tpu.memory_space<vmem>>, %arg6: memref<32x128xbf16, #tpu.memory_space<vmem>>, %arg7: memref<8x32xf32, #tpu.memory_space<vmem>>, %arg8: memref<8x128xf32, #tpu.memory_space<vmem>>) attributes {dimension_semantics = [#tpu.dimension_semantics<parallel>], iteration_bounds = array<i64: 2>, scalar_prefetch = 0 : i64, scratch_operands = 0 : i64, tpu.core_type = #tpu.core_type<tc>, window_params = [{transform_indices = @transform_0, window_bounds = array<i64: 8, 32>}, {pipeline_mode = #tpu.pipeline_mode<synchronous>, transform_indices = @transform_1, window_bounds = array<i64: 32, 384>}, {pipeline_mode = #tpu.pipeline_mode<synchronous>, transform_indices = @transform_2, window_bounds = array<i64: 128, 32>}, {pipeline_mode = #tpu.pipeline_mode<synchronous>, transform_indices = @transform_3, window_bounds = array<i64: 32, 64>}, {pipeline_mode = #tpu.pipeline_mode<synchronous>, transform_indices = @transform_4, window_bounds = array<i64: 64, 32>}, {pipeline_mode = #tpu.pipeline_mode<synchronous>, transform_indices = @transform_5, window_bounds = array<i64: 32, 128>}, {pipeline_mode = #tpu.pipeline_mode<synchronous>, transform_indices = @transform_6, window_bounds = array<i64: 8, 32>}, {transform_indices = @transform_7, window_bounds = array<i64: 8, 128>}]} {
    %c0 = arith.constant 0 : index
    %c0_0 = arith.constant 0 : index
    %0 = vector.load %arg1[%c0, %c0_0] : memref<8x32xf32, #tpu.memory_space<vmem>>, vector<8x32xf32>
    %c0_1 = arith.constant 0 : index
    %c0_2 = arith.constant 0 : index
    %1 = vector.load %arg7[%c0_1, %c0_2] : memref<8x32xf32, #tpu.memory_space<vmem>>, vector<1x32xf32>
    %c1 = arith.constant 1 : index
    %c0_3 = arith.constant 0 : index
    %2 = vector.load %arg7[%c1, %c0_3] : memref<8x32xf32, #tpu.memory_space<vmem>>, vector<1x32xf32>
    %c2 = arith.constant 2 : index
    %c0_4 = arith.constant 0 : index
    %3 = vector.load %arg7[%c2, %c0_4] : memref<8x32xf32, #tpu.memory_space<vmem>>, vector<1x32xf32>
    %c3 = arith.constant 3 : index
    %c0_5 = arith.constant 0 : index
    %4 = vector.load %arg7[%c3, %c0_5] : memref<8x32xf32, #tpu.memory_space<vmem>>, vector<1x32xf32>
    %c4 = arith.constant 4 : index
    %c0_6 = arith.constant 0 : index
    %5 = vector.load %arg7[%c4, %c0_6] : memref<8x32xf32, #tpu.memory_space<vmem>>, vector<1x32xf32>
    %c5 = arith.constant 5 : index
    %c0_7 = arith.constant 0 : index
    %6 = vector.load %arg7[%c5, %c0_7] : memref<8x32xf32, #tpu.memory_space<vmem>>, vector<1x32xf32>
    %cst = arith.constant dense<0.000000e+00> : vector<8xf32>
    %7 = vector.multi_reduction <add>, %0, %cst [1] : vector<8x32xf32> to vector<8xf32>
    %8 = vector.shape_cast %7 : vector<8xf32> to vector<8x1xf32>
    %cst_8 = arith.constant 3.200000e+01 : f32
    %9 = vector.broadcast %cst_8 : f32 to vector<8x1xf32>
    %10 = arith.divf %8, %9 : vector<8x1xf32>
    %11 = vector.broadcast %10 : vector<8x1xf32> to vector<8x32xf32>
    %12 = arith.subf %0, %11 : vector<8x32xf32>
    %13 = arith.mulf %12, %12 : vector<8x32xf32>
    %cst_9 = arith.constant dense<0.000000e+00> : vector<8xf32>
    %14 = vector.multi_reduction <add>, %13, %cst_9 [1] : vector<8x32xf32> to vector<8xf32>
    %15 = vector.shape_cast %14 : vector<8xf32> to vector<8x1xf32>
    %cst_10 = arith.constant 3.200000e+01 : f32
    %16 = vector.broadcast %cst_10 : f32 to vector<8x1xf32>
    %17 = arith.divf %15, %16 : vector<8x1xf32>
    %18 = vector.broadcast %10 : vector<8x1xf32> to vector<8x32xf32>
    %19 = arith.subf %0, %18 : vector<8x32xf32>
    %cst_11 = arith.constant 9.99999974E-6 : f32
    %20 = vector.broadcast %cst_11 : f32 to vector<8x1xf32>
    %21 = arith.addf %17, %20 : vector<8x1xf32>
    %22 = math.rsqrt %21 : vector<8x1xf32>
    %23 = vector.broadcast %22 : vector<8x1xf32> to vector<8x32xf32>
    %24 = arith.mulf %19, %23 : vector<8x32xf32>
    %25 = vector.broadcast %1 : vector<1x32xf32> to vector<8x32xf32>
    %26 = arith.mulf %24, %25 : vector<8x32xf32>
    %27 = vector.broadcast %2 : vector<1x32xf32> to vector<8x32xf32>
    %28 = arith.addf %26, %27 : vector<8x32xf32>
    %29 = arith.truncf %28 : vector<8x32xf32> to vector<8x32xbf16>
    %c0_12 = arith.constant 0 : index
    %c0_13 = arith.constant 0 : index
    %30 = vector.load %arg2[%c0_12, %c0_13] : memref<32x384xbf16, #tpu.memory_space<vmem>>, vector<32x384xbf16>
    %cst_14 = arith.constant dense<0.000000e+00> : vector<8x384xf32>
    %31 = tpu.matmul %29, %30, %cst_14 {dimension_numbers = #tpu.dot_dimension_numbers<[1], [0], [0], [1], [0, 0, 1, 1], [], []>} : vector<8x32xbf16>, vector<32x384xbf16>, vector<8x384xf32> -> vector<8x384xf32>
    %32 = arith.truncf %31 : vector<8x384xf32> to vector<8x384xbf16>
    %33 = vector.extract_strided_slice %32 {offsets = [0, 0], sizes = [8, 128], strides = [1, 1]} : vector<8x384xbf16> to vector<8x128xbf16>
    %34 = vector.extract_strided_slice %32 {offsets = [0, 128], sizes = [8, 128], strides = [1, 1]} : vector<8x384xbf16> to vector<8x128xbf16>
    %35 = vector.extract_strided_slice %32 {offsets = [0, 256], sizes = [8, 128], strides = [1, 1]} : vector<8x384xbf16> to vector<8x128xbf16>
    %cst_15 = arith.constant dense<0.000000e+00> : vector<8x8xf32>
    %36 = tpu.matmul %33, %34, %cst_15 {dimension_numbers = #tpu.dot_dimension_numbers<[1], [1], [0], [0], [0, 0, 1, 0], [], []>} : vector<8x128xbf16>, vector<8x128xbf16>, vector<8x8xf32> -> vector<8x8xf32>
    %37 = tpu.iota {dimensions = array<i32: 0>} : vector<8x8xi32>
    %38 = tpu.iota {dimensions = array<i32: 1>} : vector<8x8xi32>
    %39 = arith.cmpi sge, %37, %38 : vector<8x8xi32>
    %cst_16 = arith.constant -1.000000e+30 : f32
    %40 = vector.broadcast %cst_16 : f32 to vector<8x8xf32>
    %41 = arith.select %39, %36, %40 : vector<8x8xi1>, vector<8x8xf32>
    %cst_17 = arith.constant dense<0xFF800000> : vector<8xf32>
    %42 = vector.multi_reduction <maximumf>, %41, %cst_17 [1] : vector<8x8xf32> to vector<8xf32>
    %43 = vector.shape_cast %42 : vector<8xf32> to vector<8x1xf32>
    %44 = vector.broadcast %43 : vector<8x1xf32> to vector<8x8xf32>
    %45 = arith.subf %41, %44 : vector<8x8xf32>
    %46 = math.exp %45 : vector<8x8xf32>
    %cst_18 = arith.constant dense<0.000000e+00> : vector<8xf32>
    %47 = vector.multi_reduction <add>, %46, %cst_18 [1] : vector<8x8xf32> to vector<8xf32>
    %48 = vector.shape_cast %47 : vector<8xf32> to vector<8x1xf32>
    %49 = tpu.reciprocal %48 {approx = true} : vector<8x1xf32> -> vector<8x1xf32>
    %50 = vector.broadcast %49 : vector<8x1xf32> to vector<8x8xf32>
    %51 = arith.mulf %46, %50 : vector<8x8xf32>
    %52 = arith.truncf %51 : vector<8x8xf32> to vector<8x8xbf16>
    %cst_19 = arith.constant dense<0.000000e+00> : vector<8x128xf32>
    %53 = tpu.matmul %52, %35, %cst_19 {dimension_numbers = #tpu.dot_dimension_numbers<[1], [0], [0], [1], [0, 0, 1, 1], [], []>} : vector<8x8xbf16>, vector<8x128xbf16>, vector<8x128xf32> -> vector<8x128xf32>
    %54 = arith.truncf %53 : vector<8x128xf32> to vector<8x128xbf16>
    %c0_20 = arith.constant 0 : index
    %c0_21 = arith.constant 0 : index
    %55 = vector.load %arg3[%c0_20, %c0_21] : memref<128x32xbf16, #tpu.memory_space<vmem>>, vector<128x32xbf16>
    %cst_22 = arith.constant dense<0.000000e+00> : vector<8x32xf32>
    %56 = tpu.matmul %54, %55, %cst_22 {dimension_numbers = #tpu.dot_dimension_numbers<[1], [0], [0], [1], [0, 0, 1, 1], [], []>} : vector<8x128xbf16>, vector<128x32xbf16>, vector<8x32xf32> -> vector<8x32xf32>
    %57 = arith.addf %0, %56 : vector<8x32xf32>
    %cst_23 = arith.constant dense<0.000000e+00> : vector<8xf32>
    %58 = vector.multi_reduction <add>, %57, %cst_23 [1] : vector<8x32xf32> to vector<8xf32>
    %59 = vector.shape_cast %58 : vector<8xf32> to vector<8x1xf32>
    %cst_24 = arith.constant 3.200000e+01 : f32
    %60 = vector.broadcast %cst_24 : f32 to vector<8x1xf32>
    %61 = arith.divf %59, %60 : vector<8x1xf32>
    %62 = vector.broadcast %61 : vector<8x1xf32> to vector<8x32xf32>
    %63 = arith.subf %57, %62 : vector<8x32xf32>
    %64 = arith.mulf %63, %63 : vector<8x32xf32>
    %cst_25 = arith.constant dense<0.000000e+00> : vector<8xf32>
    %65 = vector.multi_reduction <add>, %64, %cst_25 [1] : vector<8x32xf32> to vector<8xf32>
    %66 = vector.shape_cast %65 : vector<8xf32> to vector<8x1xf32>
    %cst_26 = arith.constant 3.200000e+01 : f32
    %67 = vector.broadcast %cst_26 : f32 to vector<8x1xf32>
    %68 = arith.divf %66, %67 : vector<8x1xf32>
    %69 = vector.broadcast %61 : vector<8x1xf32> to vector<8x32xf32>
    %70 = arith.subf %57, %69 : vector<8x32xf32>
    %cst_27 = arith.constant 9.99999974E-6 : f32
    %71 = vector.broadcast %cst_27 : f32 to vector<8x1xf32>
    %72 = arith.addf %68, %71 : vector<8x1xf32>
    %73 = math.rsqrt %72 : vector<8x1xf32>
    %74 = vector.broadcast %73 : vector<8x1xf32> to vector<8x32xf32>
    %75 = arith.mulf %70, %74 : vector<8x32xf32>
    %76 = vector.broadcast %3 : vector<1x32xf32> to vector<8x32xf32>
    %77 = arith.mulf %75, %76 : vector<8x32xf32>
    %78 = vector.broadcast %4 : vector<1x32xf32> to vector<8x32xf32>
    %79 = arith.addf %77, %78 : vector<8x32xf32>
    %80 = arith.truncf %79 : vector<8x32xf32> to vector<8x32xbf16>
    %c0_28 = arith.constant 0 : index
    %c0_29 = arith.constant 0 : index
    %81 = vector.load %arg4[%c0_28, %c0_29] : memref<32x64xbf16, #tpu.memory_space<vmem>>, vector<32x64xbf16>
    %cst_30 = arith.constant dense<0.000000e+00> : vector<8x64xf32>
    %82 = tpu.matmul %80, %81, %cst_30 {dimension_numbers = #tpu.dot_dimension_numbers<[1], [0], [0], [1], [0, 0, 1, 1], [], []>} : vector<8x32xbf16>, vector<32x64xbf16>, vector<8x64xf32> -> vector<8x64xf32>
    %83 = arith.mulf %82, %82 : vector<8x64xf32>
    %84 = arith.mulf %82, %83 : vector<8x64xf32>
    %cst_31 = arith.constant 4.471500e-02 : f32
    %85 = vector.broadcast %cst_31 : f32 to vector<8x64xf32>
    %86 = arith.mulf %85, %84 : vector<8x64xf32>
    %87 = arith.addf %82, %86 : vector<8x64xf32>
    %cst_32 = arith.constant 0.797884583 : f32
    %88 = vector.broadcast %cst_32 : f32 to vector<8x64xf32>
    %89 = arith.mulf %88, %87 : vector<8x64xf32>
    %90 = math.tanh %89 : vector<8x64xf32>
    %cst_33 = arith.constant 1.000000e+00 : f32
    %91 = vector.broadcast %cst_33 : f32 to vector<8x64xf32>
    %92 = arith.addf %91, %90 : vector<8x64xf32>
    %cst_34 = arith.constant 5.000000e-01 : f32
    %93 = vector.broadcast %cst_34 : f32 to vector<8x64xf32>
    %94 = arith.mulf %93, %92 : vector<8x64xf32>
    %95 = arith.mulf %82, %94 : vector<8x64xf32>
    %96 = arith.truncf %95 : vector<8x64xf32> to vector<8x64xbf16>
    %c0_35 = arith.constant 0 : index
    %c0_36 = arith.constant 0 : index
    %97 = vector.load %arg5[%c0_35, %c0_36] : memref<64x32xbf16, #tpu.memory_space<vmem>>, vector<64x32xbf16>
    %cst_37 = arith.constant dense<0.000000e+00> : vector<8x32xf32>
    %98 = tpu.matmul %96, %97, %cst_37 {dimension_numbers = #tpu.dot_dimension_numbers<[1], [0], [0], [1], [0, 0, 1, 1], [], []>} : vector<8x64xbf16>, vector<64x32xbf16>, vector<8x32xf32> -> vector<8x32xf32>
    %99 = arith.addf %57, %98 : vector<8x32xf32>
    %cst_38 = arith.constant dense<0.000000e+00> : vector<8xf32>
    %100 = vector.multi_reduction <add>, %99, %cst_38 [1] : vector<8x32xf32> to vector<8xf32>
    %101 = vector.shape_cast %100 : vector<8xf32> to vector<8x1xf32>
    %cst_39 = arith.constant 3.200000e+01 : f32
    %102 = vector.broadcast %cst_39 : f32 to vector<8x1xf32>
    %103 = arith.divf %101, %102 : vector<8x1xf32>
    %104 = vector.broadcast %103 : vector<8x1xf32> to vector<8x32xf32>
    %105 = arith.subf %99, %104 : vector<8x32xf32>
    %106 = arith.mulf %105, %105 : vector<8x32xf32>
    %cst_40 = arith.constant dense<0.000000e+00> : vector<8xf32>
    %107 = vector.multi_reduction <add>, %106, %cst_40 [1] : vector<8x32xf32> to vector<8xf32>
    %108 = vector.shape_cast %107 : vector<8xf32> to vector<8x1xf32>
    %cst_41 = arith.constant 3.200000e+01 : f32
    %109 = vector.broadcast %cst_41 : f32 to vector<8x1xf32>
    %110 = arith.divf %108, %109 : vector<8x1xf32>
    %111 = vector.broadcast %103 : vector<8x1xf32> to vector<8x32xf32>
    %112 = arith.subf %99, %111 : vector<8x32xf32>
    %cst_42 = arith.constant 9.99999974E-6 : f32
    %113 = vector.broadcast %cst_42 : f32 to vector<8x1xf32>
    %114 = arith.addf %110, %113 : vector<8x1xf32>
    %115 = math.rsqrt %114 : vector<8x1xf32>
    %116 = vector.broadcast %115 : vector<8x1xf32> to vector<8x32xf32>
    %117 = arith.mulf %112, %116 : vector<8x32xf32>
    %118 = vector.broadcast %5 : vector<1x32xf32> to vector<8x32xf32>
    %119 = arith.mulf %117, %118 : vector<8x32xf32>
    %120 = vector.broadcast %6 : vector<1x32xf32> to vector<8x32xf32>
    %121 = arith.addf %119, %120 : vector<8x32xf32>
    %122 = arith.truncf %121 : vector<8x32xf32> to vector<8x32xbf16>
    %c0_43 = arith.constant 0 : index
    %c0_44 = arith.constant 0 : index
    %123 = vector.load %arg6[%c0_43, %c0_44] : memref<32x128xbf16, #tpu.memory_space<vmem>>, vector<32x128xbf16>
    %cst_45 = arith.constant dense<0.000000e+00> : vector<8x128xf32>
    %124 = tpu.matmul %122, %123, %cst_45 {dimension_numbers = #tpu.dot_dimension_numbers<[1], [0], [0], [1], [0, 0, 1, 1], [], []>} : vector<8x32xbf16>, vector<32x128xbf16>, vector<8x128xf32> -> vector<8x128xf32>
    %c0_46 = arith.constant 0 : index
    %c0_47 = arith.constant 0 : index
    %125 = vector.load %arg8[%c0_46, %c0_47] : memref<8x128xf32, #tpu.memory_space<vmem>>, vector<8x128xf32>
    tpu.vector_store %arg8[%c0_46, %c0_47], %124 {strides = array<i32>} : memref<8x128xf32, #tpu.memory_space<vmem>>, vector<8x128xf32>,
    return
  }
  func.func @transform_0(%arg0: i32) -> (i32, i32) {
    %c0_i32 = arith.constant 0 : i32
    %c0_i32_0 = arith.constant 0 : i32
    return %arg0, %c0_i32 : i32, i32
  }
  func.func @transform_1(%arg0: i32) -> (i32, i32) {
    %c0_i32 = arith.constant 0 : i32
    %c0_i32_0 = arith.constant 0 : i32
    %c0_i32_1 = arith.constant 0 : i32
    return %c0_i32, %c0_i32_0 : i32, i32
  }
  func.func @transform_2(%arg0: i32) -> (i32, i32) {
    %c0_i32 = arith.constant 0 : i32
    %c0_i32_0 = arith.constant 0 : i32
    %c0_i32_1 = arith.constant 0 : i32
    return %c0_i32, %c0_i32_0 : i32, i32
  }
  func.func @transform_3(%arg0: i32) -> (i32, i32) {
    %c0_i32 = arith.constant 0 : i32
    %c0_i32_0 = arith.constant 0 : i32
    %c0_i32_1 = arith.constant 0 : i32
    return %c0_i32, %c0_i32_0 : i32, i32
  }
  func.func @transform_4(%arg0: i32) -> (i32, i32) {
    %c0_i32 = arith.constant 0 : i32
    %c0_i32_0 = arith.constant 0 : i32
    %c0_i32_1 = arith.constant 0 : i32
    return %c0_i32, %c0_i32_0 : i32, i32
  }
  func.func @transform_5(%arg0: i32) -> (i32, i32) {
    %c0_i32 = arith.constant 0 : i32
    %c0_i32_0 = arith.constant 0 : i32
    %c0_i32_1 = arith.constant 0 : i32
    return %c0_i32, %c0_i32_0 : i32, i32
  }
  func.func @transform_6(%arg0: i32) -> (i32, i32) {
    %c0_i32 = arith.constant 0 : i32
    %c0_i32_0 = arith.constant 0 : i32
    %c0_i32_1 = arith.constant 0 : i32
    return %c0_i32, %c0_i32_0 : i32, i32
  }
  func.func @transform_7(%arg0: i32) -> (i32, i32) {
    %c0_i32 = arith.constant 0 : i32
    %c0_i32_0 = arith.constant 0 : i32
    return %arg0, %c0_i32 : i32, i32
  }
}

</mosaic_0001>

<llo_original>
// kernel: fwd.1
$region0: #{fwd.1}
  #allocation0 [shape = 'u32[]', space=smem, size = 0x4, offset = 0x4, fixed_abs, tag = 'smem constant byte address 0x4 - core index']
  #allocation1 [shape = 'u32[144,128]{1,0:T(1,128)}', space=vmem, size = 0x12000, scoped, tag = 'internal scratch']
  %s0 = inlined_call_operand.vmem [shape: f32[16,32], index: 0, kind: input, shape index: {}]
  %s1 = inlined_call_operand.vmem [shape: bf16[32,384], index: 1, kind: input, shape index: {}]
  %s2 = inlined_call_operand.vmem [shape: bf16[128,32], index: 2, kind: input, shape index: {}]
  %s3 = inlined_call_operand.vmem [shape: bf16[32,64], index: 3, kind: input, shape index: {}]
  %s4 = inlined_call_operand.vmem [shape: bf16[64,32], index: 4, kind: input, shape index: {}]
  %s5 = inlined_call_operand.vmem [shape: bf16[32,128], index: 5, kind: input, shape index: {}]
  %s6 = inlined_call_operand.vmem [shape: f32[8,32], index: 6, kind: input, shape index: {}]
  %s7 = inlined_call_operand.vmem [shape: f32[16,128], index: 7, kind: output, shape index: {}]
  %s8 = sld [smem:[#allocation0]]
  $region61: #{fwd.1} parent=0
    _
  %s10 = ssub.s32 1, %s8
  %s11 = scalar_select 0, %s10, %s8
  loop: start=0, step=1, limit=4
  $region2: #{fwd.1} parent=0 // loop_pre_header
    _
  $region3: #{fwd.1} parent=0 // loop_header
    %s13 = sphi 0, %s17
    %p14 = scmp.ge.s32.totalorder %s13, 4
    %s23 = sphi 0, %s25
    %s26 = sphi 0, %s23
    %s27 = sphi 0, %s26
    %s43 = sphi 0, %s27
    %s47 = sphi 0, %s47
    %s49 = sphi 0, %s47
    %s50 = sphi 0, %s49
    %s64 = sphi 0, %s50
    %s68 = sphi 0, %s68
    %s70 = sphi 0, %s68
    %s71 = sphi 0, %s70
    %s85 = sphi 0, %s71
    %s89 = sphi 0, %s89
    %s91 = sphi 0, %s89
    %s92 = sphi 0, %s91
    %s106 = sphi 0, %s92
    %s110 = sphi 0, %s110
    %s112 = sphi 0, %s110
    %s113 = sphi 0, %s112
    %s127 = sphi 0, %s113
    %s131 = sphi 0, %s131
    %s133 = sphi 0, %s131
    %s134 = sphi 0, %s133
    %s148 = sphi 0, %s134
    %s152 = sphi 0, %s152
    %s154 = sphi 0, %s152
    %s155 = sphi 0, %s154
    %s169 = sphi 0, %s155
    %s175 = sphi 0, %s177
    %s178 = sphi 0, %s175
    %s179 = sphi 0, %s178
    %s195 = sphi 0, %s179
  $region4: #{fwd.1} parent=0 // loop_header_branch
    %16 = sbr.rel (%p14) target = $region8
  $region5: #{fwd.1} parent=0 // loop_body
    %s18 = ssub.s32 %s13, 1
    %s19 = ssub.s32 %s13, 2
    %s20 = sadd.s32 %s13, 1
    %s21 = ssub.s32 %s13, %s20
    %p22 = scmp.eq.s32.totalorder %s21, 0
    %s24 = sadd.s32 %s23, 1
    %s25 = scalar_select %p22, %s23, %s24
    %p28 = pneg %p22
    %p29 = scmp.eq.s32.totalorder %s13, 1
    %p30 = por %p28, %p29
    %p31 = scmp.ne.s32.totalorder %s23, %s26
    %p32 = scmp.eq.s32.totalorder %s13, 0
    %p33 = por %p31, %p32
    %p34 = scmp.ne.s32.totalorder %s23, %s26
    %p35 = scmp.eq.s32.totalorder %s18, 1
    %p36 = por %p34, %p35
    %p37 = scmp.ne.s32.totalorder %s26, %s27
    %p38 = scmp.eq.s32.totalorder %s18, 0
    %p39 = por %p37, %p38
    %p40 = scmp.ne.s32.totalorder %s26, %s27
    %p41 = scmp.eq.s32.totalorder %s19, 1
    %p42 = por %p40, %p41
    %p44 = scmp.ne.s32.totalorder %s27, %s43
    %p45 = scmp.eq.s32.totalorder %s19, 0
    %p46 = por %p44, %p45
    %s48 = sadd.s32 %s47, 1
    %p51 = scmp.eq.s32.totalorder %s13, 1
    %p52 = scmp.ne.s32.totalorder %s47, %s49
    %p53 = scmp.eq.s32.totalorder %s13, 0
    %p54 = por %p52, %p53
    %p55 = scmp.ne.s32.totalorder %s47, %s49
    %p56 = scmp.eq.s32.totalorder %s18, 1
    %p57 = por %p55, %p56
    %p58 = scmp.ne.s32.totalorder %s49, %s50
    %p59 = scmp.eq.s32.totalorder %s18, 0
    %p60 = por %p58, %p59
    %p61 = scmp.ne.s32.totalorder %s49, %s50
    %p62 = scmp.eq.s32.totalorder %s19, 1
    %p63 = por %p61, %p62
    %p65 = scmp.ne.s32.totalorder %s50, %s64
    %p66 = scmp.eq.s32.totalorder %s19, 0
    %p67 = por %p65, %p66
    %s69 = sadd.s32 %s68, 1
    %p72 = scmp.eq.s32.totalorder %s13, 1
    %p73 = scmp.ne.s32.totalorder %s68, %s70
    %p74 = scmp.eq.s32.totalorder %s13, 0
    %p75 = por %p73, %p74
    %p76 = scmp.ne.s32.totalorder %s68, %s70
    %p77 = scmp.eq.s32.totalorder %s18, 1
    %p78 = por %p76, %p77
    %p79 = scmp.ne.s32.totalorder %s70, %s71
    %p80 = scmp.eq.s32.totalorder %s18, 0
    %p81 = por %p79, %p80
    %p82 = scmp.ne.s32.totalorder %s70, %s71
    %p83 = scmp.eq.s32.totalorder %s19, 1
    %p84 = por %p82, %p83
    %p86 = scmp.ne.s32.totalorder %s71, %s85
    %p87 = scmp.eq.s32.totalorder %s19, 0
    %p88 = por %p86, %p87
    %s90 = sadd.s32 %s89, 1
    %p93 = scmp.eq.s32.totalorder %s13, 1
    %p94 = scmp.ne.s32.totalorder %s89, %s91
    %p95 = scmp.eq.s32.totalorder %s13, 0
    %p96 = por %p94, %p95
    %p97 = scmp.ne.s32.totalorder %s89, %s91
    %p98 = scmp.eq.s32.totalorder %s18, 1
    %p99 = por %p97, %p98
    %p100 = scmp.ne.s32.totalorder %s91, %s92
    %p101 = scmp.eq.s32.totalorder %s18, 0
    %p102 = por %p100, %p101
    %p103 = scmp.ne.s32.totalorder %s91, %s92
    %p104 = scmp.eq.s32.totalorder %s19, 1
    %p105 = por %p103, %p104
    %p107 = scmp.ne.s32.totalorder %s92, %s106
    %p108 = scmp.eq.s32.totalorder %s19, 0
    %p109 = por %p107, %p108
    %s111 = sadd.s32 %s110, 1
    %p114 = scmp.eq.s32.totalorder %s13, 1
    %p115 = scmp.ne.s32.totalorder %s110, %s112
    %p116 = scmp.eq.s32.totalorder %s13, 0
    %p117 = por %p115, %p116
    %p118 = scmp.ne.s32.totalorder %s110, %s112
    %p119 = scmp.eq.s32.totalorder %s18, 1
    %p120 = por %p118, %p119
    %p121 = scmp.ne.s32.totalorder %s112, %s113
    %p122 = scmp.eq.s32.totalorder %s18, 0
    %p123 = por %p121, %p122
    %p124 = scmp.ne.s32.totalorder %s112, %s113
    %p125 = scmp.eq.s32.totalorder %s19, 1
    %p126 = por %p124, %p125
    %p128 = scmp.ne.s32.totalorder %s113, %s127
    %p129 = scmp.eq.s32.totalorder %s19, 0
    %p130 = por %p128, %p129
    %s132 = sadd.s32 %s131, 1
    %p135 = scmp.eq.s32.totalorder %s13, 1
    %p136 = scmp.ne.s32.totalorder %s131, %s133
    %p137 = scmp.eq.s32.totalorder %s13, 0
    %p138 = por %p136, %p137
    %p139 = scmp.ne.s32.totalorder %s131, %s133
    %p140 = scmp.eq.s32.totalorder %s18, 1
    %p141 = por %p139, %p140
    %p142 = scmp.ne.s32.totalorder %s133, %s134
    %p143 = scmp.eq.s32.totalorder %s18, 0
    %p144 = por %p142, %p143
    %p145 = scmp.ne.s32.totalorder %s133, %s134
    %p146 = scmp.eq.s32.totalorder %s19, 1
    %p147 = por %p145, %p146
    %p149 = scmp.ne.s32.totalorder %s134, %s148
    %p150 = scmp.eq.s32.totalorder %s19, 0
    %p151 = por %p149, %p150
    %s153 = sadd.s32 %s152, 1
    %p156 = scmp.eq.s32.totalorder %s13, 1
    %p157 = scmp.ne.s32.totalorder %s152, %s154
    %p158 = scmp.eq.s32.totalorder %s13, 0
    %p159 = por %p157, %p158
    %p160 = scmp.ne.s32.totalorder %s152, %s154
    %p161 = scmp.eq.s32.totalorder %s18, 1
    %p162 = por %p160, %p161
    %p163 = scmp.ne.s32.totalorder %s154, %s155
    %p164 = scmp.eq.s32.totalorder %s18, 0
    %p165 = por %p163, %p164
    %p166 = scmp.ne.s32.totalorder %s154, %s155
    %p167 = scmp.eq.s32.totalorder %s19, 1
    %p168 = por %p166, %p167
    %p170 = scmp.ne.s32.totalorder %s155, %s169
    %p171 = scmp.eq.s32.totalorder %s19, 0
    %p172 = por %p170, %p171
    %s173 = ssub.s32 %s13, %s20
    %p174 = scmp.eq.s32.totalorder %s173, 0
    %s176 = sadd.s32 %s175, 1
    %s177 = scalar_select %p174, %s175, %s176
    %p180 = pneg %p174
    %p181 = scmp.eq.s32.totalorder %s13, 1
    %p182 = por %p180, %p181
    %p183 = scmp.ne.s32.totalorder %s175, %s178
    %p184 = scmp.eq.s32.totalorder %s13, 0
    %p185 = por %p183, %p184
    %p186 = scmp.ne.s32.totalorder %s175, %s178
    %p187 = scmp.eq.s32.totalorder %s18, 1
    %p188 = por %p186, %p187
    %p189 = scmp.ne.s32.totalorder %s178, %s179
    %p190 = scmp.eq.s32.totalorder %s18, 0
    %p191 = por %p189, %p190
    %p192 = scmp.ne.s32.totalorder %s178, %s179
    %p193 = scmp.eq.s32.totalorder %s19, 1
    %p194 = por %p192, %p193
    %p196 = scmp.ne.s32.totalorder %s179, %s195
    %p197 = scmp.eq.s32.totalorder %s19, 0
    %p198 = por %p196, %p197
    %p199 = scmp.le.s32.totalorder 1, %s13
    %p200 = scmp.lt.s32.totalorder %s13, 3
    %p201 = pnand %p199, %p200
    %p202 = pneg %p201
    // Predicated region
    $region9: #{fwd.1} parent=5 // pred_check
      _
    $region10: #{fwd.1} parent=5 // pred_check_branch
      %204 = sbr.rel (%p201) target = $region12
    $region11: #{fwd.1} parent=5 // pred_region
      %s205 = ssub.s32 %s13, 1
      // Predicated region
      $region13: #{fwd.1} parent=11 // pred_check
        %p206 = pneg %p60
      $region14: #{fwd.1} parent=11 // pred_check_branch
        %208 = sbr.rel (%p206) target = $region16
      $region15: #{fwd.1} parent=11 // pred_region
        _
      $region16: #{fwd.1} parent=11 // pred_fallthru
        _
      // Predicated region
      $region17: #{fwd.1} parent=11 // pred_check
        %p209 = pneg %p81
      $region18: #{fwd.1} parent=11 // pred_check_branch
        %211 = sbr.rel (%p209) target = $region20
      $region19: #{fwd.1} parent=11 // pred_region
        _
      $region20: #{fwd.1} parent=11 // pred_fallthru
        _
      // Predicated region
      $region21: #{fwd.1} parent=11 // pred_check
        %p212 = pneg %p102
      $region22: #{fwd.1} parent=11 // pred_check_branch
        %214 = sbr.rel (%p212) target = $region24
      $region23: #{fwd.1} parent=11 // pred_region
        _
      $region24: #{fwd.1} parent=11 // pred_fallthru
        _
      // Predicated region
      $region25: #{fwd.1} parent=11 // pred_check
        %p215 = pneg %p123
      $region26: #{fwd.1} parent=11 // pred_check_branch
        %217 = sbr.rel (%p215) target = $region28
      $region27: #{fwd.1} parent=11 // pred_region
        _
      $region28: #{fwd.1} parent=11 // pred_fallthru
        _
      // Predicated region
      $region29: #{fwd.1} parent=11 // pred_check
        %p218 = pneg %p144
      $region30: #{fwd.1} parent=11 // pred_check_branch
        %220 = sbr.rel (%p218) target = $region32
      $region31: #{fwd.1} parent=11 // pred_region
        _
      $region32: #{fwd.1} parent=11 // pred_fallthru
        _
      // Predicated region
      $region33: #{fwd.1} parent=11 // pred_check
        %p221 = pneg %p165
      $region34: #{fwd.1} parent=11 // pred_check_branch
        %223 = sbr.rel (%p221) target = $region36
      $region35: #{fwd.1} parent=11 // pred_region
        _
      $region36: #{fwd.1} parent=11 // pred_fallthru
        _
    $region12: #{fwd.1} parent=5 // pred_fallthru
      _
    %p224 = scmp.lt.s32.totalorder %s13, 2
    // Predicated region
    $region37: #{fwd.1} parent=5 // pred_check
      %p225 = pneg %p224
    $region38: #{fwd.1} parent=5 // pred_check_branch
      %227 = sbr.rel (%p225) target = $region40
    $region39: #{fwd.1} parent=5 // pred_region
      // Predicated region
      $region41: #{fwd.1} parent=39 // pred_check
        %p228 = pneg %p33
      $region42: #{fwd.1} parent=39 // pred_check_branch
        %230 = sbr.rel (%p228) target = $region44
      $region43: #{fwd.1} parent=39 // pred_region
        %p231 = scmp.lt.s32.totalorder %s13, 1
        %s232 = scalar_select %p231, %s13, 1
        %s233 = smul.addr %s232, 8
        %s234 = scalar_lea.vmem %s0, %s233
      $region44: #{fwd.1} parent=39 // pred_fallthru
        _
    $region40: #{fwd.1} parent=5 // pred_fallthru
      _
    %p235 = scmp.le.s32.totalorder 1, %s13
    %p236 = scmp.lt.s32.totalorder %s13, 3
    %p237 = pnand %p235, %p236
    %p238 = pneg %p237
    // Predicated region
    $region45: #{fwd.1} parent=5 // pred_check
      _
    $region46: #{fwd.1} parent=5 // pred_check_branch
      %240 = sbr.rel (%p237) target = $region48
    $region47: #{fwd.1} parent=5 // pred_region
      %s241 = ssub.s32 %s13, 1
      %p242 = scmp.lt.s32.totalorder %s18, 1
      %s243 = scalar_select %p242, %s18, 1
      %s244 = smul.addr %s243, 8
      %s245 = scalar_lea.vmem %s0, %s244
      %p246 = pneg %p39
      %p247 = pneg %p36
      %p248 = pneg %p60
      %p249 = pneg %p57
      %p250 = pneg %p81
      %p251 = pneg %p78
      %p252 = pneg %p102
      %p253 = pneg %p99
      %p254 = pneg %p123
      %p255 = pneg %p120
      %p256 = pneg %p144
      %p257 = pneg %p141
      %p258 = pneg %p165
      %p259 = pneg %p162
      %p260 = pneg %p191
      %p261 = pneg %p188
      %p262 = scmp.lt.s32.totalorder %s18, 1
      %s263 = scalar_select %p262, %s18, 1
      %s264 = smul.addr %s263, 8
      %s265 = scalar_lea.vmem %s7, %s264
      %p266 = scmp.lt.s32.totalorder %s18, 1
      %s267 = scalar_select %p266, %s18, 1
      %s268 = smul.addr %s267, 8
      %s269 = scalar_lea.vmem %s0, %s268
      %p270 = scmp.lt.s32.totalorder %s18, 1
      %s271 = scalar_select %p270, %s18, 1
      %s272 = smul.addr %s271, 8
      %s273 = scalar_lea.vmem %s7, %s272
      %v275 = vld [vmem:[%s269] sm:$0xff]
      %v276 = vld [vmem:[%s6] sm:$0x1]
      %v277 = vld [vmem:[%s6 + $0x1] sm:$0x1]
      %v278 = vld [vmem:[%s6 + $0x2] sm:$0x1]
      %v279 = vld [vmem:[%s6 + $0x3] sm:$0x1]
      %v280 = vld [vmem:[%s6 + $0x4] sm:$0x1]
      %v281 = vld [vmem:[%s6 + $0x5] sm:$0x1]
      %vm282 = vcmask 261120
      %v283 = vsel %vm282, %v275, 0.0
      %284 = vadd.xlane.f32.xlu0 %v283
      %v285 = vpop.xlane.xlu0 %284
      %v286 = vrcp.pop 32.0
      %v287 = vmul.f32 %v285, %v286
      %v288 = vsub.f32 %v275, %v287
      %v289 = vmul.f32 %v288, %v288
      %v290 = vsel %vm282, %v289, 0.0
      %291 = vadd.xlane.f32.xlu0 %v290
      %v292 = vpop.xlane.xlu0 %291
      %v293 = vmul.f32 %v292, %v286
      %v294 = vadd.f32 %v293, 1e-05
      %v295 = vrsqrt.pop %v294
      %v296 = vmul.f32 %v288, %v295
      %v297 = vlaneseq
      %v298 = vshrl.u32 %v297, 7
      %v299 = vsub.s32 0, %v298
      %v300 = vrot.slane %v276, %v299
      %v301 = vmul.f32 %v296, %v300
      %v302 = vlaneseq
      %v303 = vshrl.u32 %v302, 7
      %v304 = vsub.s32 0, %v303
      %v305 = vrot.slane %v277, %v304
      %v306 = vadd.f32 %v301, %v305
      %v307 = vpack.c.bf16 %v306, %v306
      %v308 = vld [vmem:[%s1] sm:$0xff]
      %v309 = vld [vmem:[%s1 + $0x8] sm:$0xf]
      %v310 = vld [vmem:[%s1 + $0xc] sm:$0xff]
      %v311 = vld [vmem:[%s1 + $0x14] sm:$0xf]
      %v312 = vld [vmem:[%s1 + $0x18] sm:$0xff]
      %v313 = vld [vmem:[%s1 + $0x20] sm:$0xf]
      %v314 = vld [vmem:[%s1 + $0x24] sm:$0xff]
      %v315 = vld [vmem:[%s1 + $0x2c] sm:$0xf]
      %v324 = vunpack.c.l.b16 %v308
      %v325 = vunpack.c.h.b16 %v308
      %v326 = vunpack.c.l.b16 %v309
      %v327 = vunpack.c.l.b16 %v310
      %v328 = vunpack.c.h.b16 %v310
      %v329 = vunpack.c.l.b16 %v311
      %v330 = vunpack.c.l.b16 %v312
      %v331 = vunpack.c.h.b16 %v312
      %v332 = vunpack.c.l.b16 %v313
      %v333 = vunpack.c.l.b16 %v314
      %v334 = vunpack.c.h.b16 %v314
      %v335 = vunpack.c.l.b16 %v315
      %v336 = vpack.c.b16 %v327, %v324
      %v337 = vpack.c.b16 %v328, %v325
      %v338 = vpack.c.b16 %v329, %v326
      %v339 = vpack.c.b16 %v333, %v330
      %v340 = vpack.c.b16 %v334, %v331
      %v341 = vpack.c.b16 %v335, %v332
      %v349 = vsel %vm282, %v307, 0
      %351 = vmatprep.subr.bf16.mxu0 0
      %352 = vmatpush1.bf16.msra.mxu0 0
      %353 = vmatprep.subr.bf16.mxu0 0
      %354 = vmatpush1.bf16.msra.mxu0 0
      %355 = vmatprep.subr.bf16.mxu0 0
      %356 = vmatpush1.bf16.msra.mxu0 0
      %357 = vmatprep.subr.bf16.mxu0 0
      %358 = vmatpush1.bf16.msra.mxu0 0
      %359 = vmatprep.subr.bf16.mxu0 0
      %360 = vmatpush1.bf16.msra.mxu0 0
      %361 = vmatprep.subr.bf16.mxu0 0
      %362 = vmatpush1.bf16.msra.mxu0 0
      %363 = vmatprep.subr.bf16.mxu0 %v340
      %364 = vmatpush1.bf16.msra.mxu0 %v339
      %365 = vmatprep.subr.bf16.mxu0 %v337
      %366 = vmatpush1.bf16.msra.mxu0 %v336
      %367 = vmatprep.subr.bf16.mxu0 0
      %368 = vmatpush2.bf16.msra.mxu0 0
      %369 = vmatprep.subr.bf16.mxu0 0
      %370 = vmatpush2.bf16.msra.mxu0 0
      %371 = vmatprep.subr.bf16.mxu0 0
      %372 = vmatpush2.bf16.msra.mxu0 0
      %373 = vmatprep.subr.bf16.mxu0 0
      %374 = vmatpush2.bf16.msra.mxu0 0
      %375 = vmatprep.subr.bf16.mxu0 0
      %376 = vmatpush2.bf16.msra.mxu0 0
      %377 = vmatprep.subr.bf16.mxu0 0
      %378 = vmatpush2.bf16.msra.mxu0 0
      %379 = vmatprep.subr.bf16.mxu0 0
      %380 = vmatpush2.bf16.msra.mxu0 0
      %381 = vmatprep.subr.bf16.mxu0 0
      %382 = vmatpush2.bf16.msra.mxu0 0
      %383 = vmatprep.mubr.bf16.mxu0 0
      %384 = vmatmul.mubr.bf16.gmra.mxu0 %v349
      %v385 = vpop.f32.mrf.mxu0
      %v386 = vadd.f32 0.0, %v385
      %v387 = vpop.f32.mrf.mxu0
      %v388 = vadd.f32 0.0, %v387
      %v389 = vpop.f32.mrf.mxu0
      %v390 = vpop.f32.mrf.mxu0
      %391 = vdwg.mxu0
      %392 = vmatprep.subr.bf16.mxu0 0
      %393 = vmatpush1.bf16.msra.mxu0 0
      %394 = vmatprep.subr.bf16.mxu0 0
      %395 = vmatpush1.bf16.msra.mxu0 0
      %396 = vmatprep.subr.bf16.mxu0 0
      %397 = vmatpush1.bf16.msra.mxu0 0
      %398 = vmatprep.subr.bf16.mxu0 0
      %399 = vmatpush1.bf16.msra.mxu0 0
      %400 = vmatprep.subr.bf16.mxu0 0
      %401 = vmatpush1.bf16.msra.mxu0 0
      %402 = vmatprep.subr.bf16.mxu0 0
      %403 = vmatpush1.bf16.msra.mxu0 0
      %404 = vmatprep.subr.bf16.mxu0 0
      %405 = vmatpush1.bf16.msra.mxu0 %v341
      %406 = vmatprep.subr.bf16.mxu0 0
      %407 = vmatpush1.bf16.msra.mxu0 %v338
      %408 = vmatprep.subr.bf16.mxu0 0
      %409 = vmatpush2.bf16.msra.mxu0 0
      %410 = vmatprep.subr.bf16.mxu0 0
      %411 = vmatpush2.bf16.msra.mxu0 0
      %412 = vmatprep.subr.bf16.mxu0 0
      %413 = vmatpush2.bf16.msra.mxu0 0
      %414 = vmatprep.subr.bf16.mxu0 0
      %415 = vmatpush2.bf16.msra.mxu0 0
      %416 = vmatprep.subr.bf16.mxu0 0
      %417 = vmatpush2.bf16.msra.mxu0 0
      %418 = vmatprep.subr.bf16.mxu0 0
      %419 = vmatpush2.bf16.msra.mxu0 0
      %420 = vmatprep.subr.bf16.mxu0 0
      %421 = vmatpush2.bf16.msra.mxu0 0
      %422 = vmatprep.subr.bf16.mxu0 0
      %423 = vmatpush2.bf16.msra.mxu0 0
      %424 = vmatprep.mubr.bf16.mxu0 0
      %425 = vmatmul.mubr.bf16.gmra.mxu0 %v349
      %v426 = vpop.f32.mrf.mxu0
      %v427 = vadd.f32 0.0, %v426
      %v428 = vpop.f32.mrf.mxu0
      %v429 = vpop.f32.mrf.mxu0
      %v430 = vpop.f32.mrf.mxu0
      %431 = vdwg.mxu0
      %v432 = vpack.c.bf16 %v386, %v386
      %v433 = vpack.c.bf16 %v388, %v388
      %v434 = vpack.c.bf16 %v427, %v427
      %435 = vmatprep.subr.bf16.mxu0 0
      %436 = vmatpush1.bf16.xpose.msra.mxu0 0
      %437 = vmatprep.subr.bf16.mxu0 0
      %438 = vmatpush1.bf16.xpose.msra.mxu0 0
      %439 = vmatprep.subr.bf16.mxu0 0
      %440 = vmatpush1.bf16.xpose.msra.mxu0 0
      %441 = vmatprep.subr.bf16.mxu0 0
      %442 = vmatpush1.bf16.xpose.msra.mxu0 0
      %443 = vmatprep.subr.bf16.mxu0 0
      %444 = vmatpush1.bf16.xpose.msra.mxu0 0
      %445 = vmatprep.subr.bf16.mxu0 0
      %446 = vmatpush1.bf16.xpose.msra.mxu0 0
      %447 = vmatprep.subr.bf16.mxu0 0
      %448 = vmatpush1.bf16.xpose.msra.mxu0 0
      %449 = vmatprep.subr.bf16.mxu0 0
      %450 = vmatpush1.bf16.xpose.msra.mxu0 %v433
      %451 = vmatprep.subr.bf16.mxu0 0
      %452 = vmatpush2.bf16.xpose.msra.mxu0 0
      %453 = vmatprep.subr.bf16.mxu0 0
      %454 = vmatpush2.bf16.xpose.msra.mxu0 0
      %455 = vmatprep.subr.bf16.mxu0 0
      %456 = vmatpush2.bf16.xpose.msra.mxu0 0
      %457 = vmatprep.subr.bf16.mxu0 0
      %458 = vmatpush2.bf16.xpose.msra.mxu0 0
      %459 = vmatprep.subr.bf16.mxu0 0
      %460 = vmatpush2.bf16.xpose.msra.mxu0 0
      %461 = vmatprep.subr.bf16.mxu0 0
      %462 = vmatpush2.bf16.xpose.msra.mxu0 0
      %463 = vmatprep.subr.bf16.mxu0 0
      %464 = vmatpush2.bf16.xpose.msra.mxu0 0
      %465 = vmatprep.subr.bf16.mxu0 0
      %466 = vmatpush2.bf16.xpose.msra.mxu0 0
      %467 = vmatprep.mubr.bf16.mxu0 0
      %468 = vmatmul.mubr.bf16.gmra.mxu0 %v432
      %v469 = vpop.f32.mrf.mxu0
      %v470 = vadd.f32 0.0, %v469
      %v471 = vpop.f32.mrf.mxu0
      %v472 = vpop.f32.mrf.mxu0
      %v473 = vpop.f32.mrf.mxu0
      %474 = vdwg.mxu0
      %v475 = vlaneseq
      %v476 = vshrl.u32 %v475, 7
      %v477 = vlaneseq
      %v478 = vand.u32 %v477, 127
      %vm479 = vcmp.ge.s32.totalorder %v476, %v478
      %v480 = vsel %vm479, %v470, -1e+30
      %vm481 = vcmask 64512
      %v482 = vsel %vm481, %v480, -inf
      %483 = vmax.xlane.f32.xlu0 %v482
      %v484 = vpop.xlane.xlu0 %483
      %v485 = vsub.f32 %v480, %v484
      %v486 = vmul.f32 %v485, 1.442695
      %v487 = vpow.pop %v486
      %v488 = vsel %vm481, %v487, 0.0
      %489 = vadd.xlane.f32.xlu0 %v488
      %v490 = vpop.xlane.xlu0 %489
      %v491 = vrcp.pop %v490
      %v492 = vmul.f32 %v487, %v491
      %v493 = vpack.c.bf16 %v492, %v492
      %v495 = vsel %vm481, %v493, 0
      %vm497 = vcmask 1043456
      %v499 = vsel %vm497, %v434, 0
      %501 = vmatprep.subr.bf16.mxu0 0
      %502 = vmatpush1.bf16.msra.mxu0 0
      %503 = vmatprep.subr.bf16.mxu0 0
      %504 = vmatpush1.bf16.msra.mxu0 0
      %505 = vmatprep.subr.bf16.mxu0 0
      %506 = vmatpush1.bf16.msra.mxu0 0
      %507 = vmatprep.subr.bf16.mxu0 0
      %508 = vmatpush1.bf16.msra.mxu0 0
      %509 = vmatprep.subr.bf16.mxu0 0
      %510 = vmatpush1.bf16.msra.mxu0 0
      %511 = vmatprep.subr.bf16.mxu0 0
      %512 = vmatpush1.bf16.msra.mxu0 0
      %513 = vmatprep.subr.bf16.mxu0 0
      %514 = vmatpush1.bf16.msra.mxu0 0
      %515 = vmatprep.subr.bf16.mxu0 0
      %516 = vmatpush1.bf16.msra.mxu0 %v499
      %517 = vmatprep.subr.bf16.mxu0 0
      %518 = vmatpush2.bf16.msra.mxu0 0
      %519 = vmatprep.subr.bf16.mxu0 0
      %520 = vmatpush2.bf16.msra.mxu0 0
      %521 = vmatprep.subr.bf16.mxu0 0
      %522 = vmatpush2.bf16.msra.mxu0 0
      %523 = vmatprep.subr.bf16.mxu0 0
      %524 = vmatpush2.bf16.msra.mxu0 0
      %525 = vmatprep.subr.bf16.mxu0 0
      %526 = vmatpush2.bf16.msra.mxu0 0
      %527 = vmatprep.subr.bf16.mxu0 0
      %528 = vmatpush2.bf16.msra.mxu0 0
      %529 = vmatprep.subr.bf16.mxu0 0
      %530 = vmatpush2.bf16.msra.mxu0 0
      %531 = vmatprep.subr.bf16.mxu0 0
      %532 = vmatpush2.bf16.msra.mxu0 0
      %533 = vmatprep.mubr.bf16.mxu0 0
      %534 = vmatmul.mubr.bf16.gmra.mxu0 %v495
      %v535 = vpop.f32.mrf.mxu0
      %v536 = vadd.f32 0.0, %v535
      %v537 = vpop.f32.mrf.mxu0
      %v538 = vpop.f32.mrf.mxu0
      %v539 = vpop.f32.mrf.mxu0
      %540 = vdwg.mxu0
      %v541 = vpack.c.bf16 %v536, %v536
      %v542 = vld [vmem:[%s2] sm:$0xf]
      %v543 = vld [vmem:[%s2 + $0x4] sm:$0xf]
      %v544 = vld [vmem:[%s2 + $0x8] sm:$0xf]
      %v545 = vld [vmem:[%s2 + $0xc] sm:$0xf]
      %v546 = vld [vmem:[%s2 + $0x10] sm:$0xf]
      %v547 = vld [vmem:[%s2 + $0x14] sm:$0xf]
      %v548 = vld [vmem:[%s2 + $0x18] sm:$0xf]
      %v549 = vld [vmem:[%s2 + $0x1c] sm:$0xf]
      %v550 = vld [vmem:[%s2 + $0x20] sm:$0xf]
      %v551 = vld [vmem:[%s2 + $0x24] sm:$0xf]
      %v552 = vld [vmem:[%s2 + $0x28] sm:$0xf]
      %v553 = vld [vmem:[%s2 + $0x2c] sm:$0xf]
      %v554 = vld [vmem:[%s2 + $0x30] sm:$0xf]
      %v555 = vld [vmem:[%s2 + $0x34] sm:$0xf]
      %v556 = vld [vmem:[%s2 + $0x38] sm:$0xf]
      %v557 = vld [vmem:[%s2 + $0x3c] sm:$0xf]
      %v574 = vunpack.c.l.b16 %v542
      %v575 = vunpack.c.l.b16 %v543
      %v576 = vunpack.c.l.b16 %v544
      %v577 = vunpack.c.l.b16 %v545
      %v578 = vunpack.c.l.b16 %v546
      %v579 = vunpack.c.l.b16 %v547
      %v580 = vunpack.c.l.b16 %v548
      %v581 = vunpack.c.l.b16 %v549
      %v582 = vunpack.c.l.b16 %v550
      %v583 = vunpack.c.l.b16 %v551
      %v584 = vunpack.c.l.b16 %v552
      %v585 = vunpack.c.l.b16 %v553
      %v586 = vunpack.c.l.b16 %v554
      %v587 = vunpack.c.l.b16 %v555
      %v588 = vunpack.c.l.b16 %v556
      %v589 = vunpack.c.l.b16 %v557
      %v590 = vpack.c.b16 %v575, %v574
      %v591 = vpack.c.b16 %v577, %v576
      %v592 = vpack.c.b16 %v579, %v578
      %v593 = vpack.c.b16 %v581, %v580
      %v594 = vpack.c.b16 %v583, %v582
      %v595 = vpack.c.b16 %v585, %v584
      %v596 = vpack.c.b16 %v587, %v586
      %v597 = vpack.c.b16 %v589, %v588
      %606 = vmatprep.subr.bf16.mxu0 0
      %607 = vmatpush1.bf16.msra.mxu0 %v597
      %608 = vmatprep.subr.bf16.mxu0 0
      %609 = vmatpush1.bf16.msra.mxu0 %v596
      %610 = vmatprep.subr.bf16.mxu0 0
      %611 = vmatpush1.bf16.msra.mxu0 %v595
      %612 = vmatprep.subr.bf16.mxu0 0
      %613 = vmatpush1.bf16.msra.mxu0 %v594
      %614 = vmatprep.subr.bf16.mxu0 0
      %615 = vmatpush1.bf16.msra.mxu0 %v593
      %616 = vmatprep.subr.bf16.mxu0 0
      %617 = vmatpush1.bf16.msra.mxu0 %v592
      %618 = vmatprep.subr.bf16.mxu0 0
      %619 = vmatpush1.bf16.msra.mxu0 %v591
      %620 = vmatprep.subr.bf16.mxu0 0
      %621 = vmatpush1.bf16.msra.mxu0 %v590
      %622 = vmatprep.subr.bf16.mxu0 0
      %623 = vmatpush2.bf16.msra.mxu0 0
      %624 = vmatprep.subr.bf16.mxu0 0
      %625 = vmatpush2.bf16.msra.mxu0 0
      %626 = vmatprep.subr.bf16.mxu0 0
      %627 = vmatpush2.bf16.msra.mxu0 0
      %628 = vmatprep.subr.bf16.mxu0 0
      %629 = vmatpush2.bf16.msra.mxu0 0
      %630 = vmatprep.subr.bf16.mxu0 0
      %631 = vmatpush2.bf16.msra.mxu0 0
      %632 = vmatprep.subr.bf16.mxu0 0
      %633 = vmatpush2.bf16.msra.mxu0 0
      %634 = vmatprep.subr.bf16.mxu0 0
      %635 = vmatpush2.bf16.msra.mxu0 0
      %636 = vmatprep.subr.bf16.mxu0 0
      %637 = vmatpush2.bf16.msra.mxu0 0
      %638 = vmatprep.mubr.bf16.mxu0 0
      %639 = vmatmul.mubr.bf16.gmra.mxu0 %v541
      %v640 = vpop.f32.mrf.mxu0
      %v641 = vadd.f32 0.0, %v640
      %v642 = vpop.f32.mrf.mxu0
      %v643 = vpop.f32.mrf.mxu0
      %v644 = vpop.f32.mrf.mxu0
      %645 = vdwg.mxu0
      %v646 = vadd.f32 %v275, %v641
      %v647 = vsel %vm282, %v646, 0.0
      %648 = vadd.xlane.f32.xlu0 %v647
      %v649 = vpop.xlane.xlu0 %648
      %v650 = vmul.f32 %v649, %v286
      %v651 = vsub.f32 %v646, %v650
      %v652 = vmul.f32 %v651, %v651
      %v653 = vsel %vm282, %v652, 0.0
      %654 = vadd.xlane.f32.xlu0 %v653
      %v655 = vpop.xlane.xlu0 %654
      %v656 = vmul.f32 %v655, %v286
      %v657 = vadd.f32 %v656, 1e-05
      %v658 = vrsqrt.pop %v657
      %v659 = vmul.f32 %v651, %v658
      %v660 = vlaneseq
      %v661 = vshrl.u32 %v660, 7
      %v662 = vsub.s32 0, %v661
      %v663 = vrot.slane %v278, %v662
      %v664 = vmul.f32 %v659, %v663
      %v665 = vlaneseq
      %v666 = vshrl.u32 %v665, 7
      %v667 = vsub.s32 0, %v666
      %v668 = vrot.slane %v279, %v667
      %v669 = vadd.f32 %v664, %v668
      %v670 = vpack.c.bf16 %v669, %v669
      %v671 = vld [vmem:[%s3] sm:$0xf]
      %v672 = vld [vmem:[%s3 + $0x4] sm:$0xf]
      %v673 = vld [vmem:[%s3 + $0x8] sm:$0xf]
      %v674 = vld [vmem:[%s3 + $0xc] sm:$0xf]
      %v679 = vunpack.c.l.b16 %v671
      %v680 = vunpack.c.l.b16 %v672
      %v681 = vunpack.c.l.b16 %v673
      %v682 = vunpack.c.l.b16 %v674
      %v683 = vpack.c.b16 %v680, %v679
      %v684 = vpack.c.b16 %v682, %v681
      %v688 = vsel %vm282, %v670, 0
      %690 = vmatprep.subr.bf16.mxu0 0
      %691 = vmatpush1.bf16.msra.mxu0 0
      %692 = vmatprep.subr.bf16.mxu0 0
      %693 = vmatpush1.bf16.msra.mxu0 0
      %694 = vmatprep.subr.bf16.mxu0 0
      %695 = vmatpush1.bf16.msra.mxu0 0
      %696 = vmatprep.subr.bf16.mxu0 0
      %697 = vmatpush1.bf16.msra.mxu0 0
      %698 = vmatprep.subr.bf16.mxu0 0
      %699 = vmatpush1.bf16.msra.mxu0 0
      %700 = vmatprep.subr.bf16.mxu0 0
      %701 = vmatpush1.bf16.msra.mxu0 0
      %702 = vmatprep.subr.bf16.mxu0 0
      %703 = vmatpush1.bf16.msra.mxu0 %v684
      %704 = vmatprep.subr.bf16.mxu0 0
      %705 = vmatpush1.bf16.msra.mxu0 %v683
      %706 = vmatprep.subr.bf16.mxu0 0
      %707 = vmatpush2.bf16.msra.mxu0 0
      %708 = vmatprep.subr.bf16.mxu0 0
      %709 = vmatpush2.bf16.msra.mxu0 0
      %710 = vmatprep.subr.bf16.mxu0 0
      %711 = vmatpush2.bf16.msra.mxu0 0
      %712 = vmatprep.subr.bf16.mxu0 0
      %713 = vmatpush2.bf16.msra.mxu0 0
      %714 = vmatprep.subr.bf16.mxu0 0
      %715 = vmatpush2.bf16.msra.mxu0 0
      %716 = vmatprep.subr.bf16.mxu0 0
      %717 = vmatpush2.bf16.msra.mxu0 0
      %718 = vmatprep.subr.bf16.mxu0 0
      %719 = vmatpush2.bf16.msra.mxu0 0
      %720 = vmatprep.subr.bf16.mxu0 0
      %721 = vmatpush2.bf16.msra.mxu0 0
      %722 = vmatprep.mubr.bf16.mxu0 0
      %723 = vmatmul.mubr.bf16.gmra.mxu0 %v688
      %v724 = vpop.f32.mrf.mxu0
      %v725 = vadd.f32 0.0, %v724
      %v726 = vpop.f32.mrf.mxu0
      %v727 = vpop.f32.mrf.mxu0
      %v728 = vpop.f32.mrf.mxu0
      %729 = vdwg.mxu0
      %v730 = vmul.f32 %v725, %v725
      %v731 = vmul.f32 %v725, %v730
      %v732 = vmul.f32 %v731, 0.044715
      %v733 = vadd.f32 %v725, %v732
      %v734 = vmul.f32 %v733, 0.7978846
      %v735 = vtanh.pop %v734
      %v736 = vadd.f32 %v735, 1.0
      %v737 = vmul.f32 %v736, 0.5
      %v738 = vmul.f32 %v725, %v737
      %v739 = vpack.c.bf16 %v738, %v738
      %v740 = vld [vmem:[%s4] sm:$0xf]
      %v741 = vld [vmem:[%s4 + $0x4] sm:$0xf]
      %v742 = vld [vmem:[%s4 + $0x8] sm:$0xf]
      %v743 = vld [vmem:[%s4 + $0xc] sm:$0xf]
      %v744 = vld [vmem:[%s4 + $0x10] sm:$0xf]
      %v745 = vld [vmem:[%s4 + $0x14] sm:$0xf]
      %v746 = vld [vmem:[%s4 + $0x18] sm:$0xf]
      %v747 = vld [vmem:[%s4 + $0x1c] sm:$0xf]
      %v756 = vunpack.c.l.b16 %v740
      %v757 = vunpack.c.l.b16 %v741
      %v758 = vunpack.c.l.b16 %v742
      %v759 = vunpack.c.l.b16 %v743
      %v760 = vunpack.c.l.b16 %v744
      %v761 = vunpack.c.l.b16 %v745
      %v762 = vunpack.c.l.b16 %v746
      %v763 = vunpack.c.l.b16 %v747
      %v764 = vpack.c.b16 %v757, %v756
      %v765 = vpack.c.b16 %v759, %v758
      %v766 = vpack.c.b16 %v761, %v760
      %v767 = vpack.c.b16 %v763, %v762
      %vm772 = vcmask 523264
      %v774 = vsel %vm772, %v739, 0
      %776 = vmatprep.subr.bf16.mxu0 0
      %777 = vmatpush1.bf16.msra.mxu0 0
      %778 = vmatprep.subr.bf16.mxu0 0
      %779 = vmatpush1.bf16.msra.mxu0 0
      %780 = vmatprep.subr.bf16.mxu0 0
      %781 = vmatpush1.bf16.msra.mxu0 0
      %782 = vmatprep.subr.bf16.mxu0 0
      %783 = vmatpush1.bf16.msra.mxu0 0
      %784 = vmatprep.subr.bf16.mxu0 0
      %785 = vmatpush1.bf16.msra.mxu0 %v767
      %786 = vmatprep.subr.bf16.mxu0 0
      %787 = vmatpush1.bf16.msra.mxu0 %v766
      %788 = vmatprep.subr.bf16.mxu0 0
      %789 = vmatpush1.bf16.msra.mxu0 %v765
      %790 = vmatprep.subr.bf16.mxu0 0
      %791 = vmatpush1.bf16.msra.mxu0 %v764
      %792 = vmatprep.subr.bf16.mxu0 0
      %793 = vmatpush2.bf16.msra.mxu0 0
      %794 = vmatprep.subr.bf16.mxu0 0
      %795 = vmatpush2.bf16.msra.mxu0 0
      %796 = vmatprep.subr.bf16.mxu0 0
      %797 = vmatpush2.bf16.msra.mxu0 0
      %798 = vmatprep.subr.bf16.mxu0 0
      %799 = vmatpush2.bf16.msra.mxu0 0
      %800 = vmatprep.subr.bf16.mxu0 0
      %801 = vmatpush2.bf16.msra.mxu0 0
      %802 = vmatprep.subr.bf16.mxu0 0
      %803 = vmatpush2.bf16.msra.mxu0 0
      %804 = vmatprep.subr.bf16.mxu0 0
      %805 = vmatpush2.bf16.msra.mxu0 0
      %806 = vmatprep.subr.bf16.mxu0 0
      %807 = vmatpush2.bf16.msra.mxu0 0
      %808 = vmatprep.mubr.bf16.mxu0 0
      %809 = vmatmul.mubr.bf16.gmra.mxu0 %v774
      %v810 = vpop.f32.mrf.mxu0
      %v811 = vadd.f32 0.0, %v810
      %v812 = vpop.f32.mrf.mxu0
      %v813 = vpop.f32.mrf.mxu0
      %v814 = vpop.f32.mrf.mxu0
      %815 = vdwg.mxu0
      %v816 = vadd.f32 %v646, %v811
      %v817 = vsel %vm282, %v816, 0.0
      %818 = vadd.xlane.f32.xlu0 %v817
      %v819 = vpop.xlane.xlu0 %818
      %v820 = vmul.f32 %v819, %v286
      %v821 = vsub.f32 %v816, %v820
      %v822 = vmul.f32 %v821, %v821
      %v823 = vsel %vm282, %v822, 0.0
      %824 = vadd.xlane.f32.xlu0 %v823
      %v825 = vpop.xlane.xlu0 %824
      %v826 = vmul.f32 %v825, %v286
      %v827 = vadd.f32 %v826, 1e-05
      %v828 = vrsqrt.pop %v827
      %v829 = vmul.f32 %v821, %v828
      %v830 = vlaneseq
      %v831 = vshrl.u32 %v830, 7
      %v832 = vsub.s32 0, %v831
      %v833 = vrot.slane %v280, %v832
      %v834 = vmul.f32 %v829, %v833
      %v835 = vlaneseq
      %v836 = vshrl.u32 %v835, 7
      %v837 = vsub.s32 0, %v836
      %v838 = vrot.slane %v281, %v837
      %v839 = vadd.f32 %v834, %v838
      %v840 = vpack.c.bf16 %v839, %v839
      %v841 = vld [vmem:[%s5] sm:$0xf]
      %v842 = vld [vmem:[%s5 + $0x4] sm:$0xf]
      %v843 = vld [vmem:[%s5 + $0x8] sm:$0xf]
      %v844 = vld [vmem:[%s5 + $0xc] sm:$0xf]
      %v849 = vunpack.c.l.b16 %v841
      %v850 = vunpack.c.l.b16 %v842
      %v851 = vunpack.c.l.b16 %v843
      %v852 = vunpack.c.l.b16 %v844
      %v853 = vpack.c.b16 %v850, %v849
      %v854 = vpack.c.b16 %v852, %v851
      %v858 = vsel %vm282, %v840, 0
      %860 = vmatprep.subr.bf16.mxu0 0
      %861 = vmatpush1.bf16.msra.mxu0 0
      %862 = vmatprep.subr.bf16.mxu0 0
      %863 = vmatpush1.bf16.msra.mxu0 0
      %864 = vmatprep.subr.bf16.mxu0 0
      %865 = vmatpush1.bf16.msra.mxu0 0
      %866 = vmatprep.subr.bf16.mxu0 0
      %867 = vmatpush1.bf16.msra.mxu0 0
      %868 = vmatprep.subr.bf16.mxu0 0
      %869 = vmatpush1.bf16.msra.mxu0 0
      %870 = vmatprep.subr.bf16.mxu0 0
      %871 = vmatpush1.bf16.msra.mxu0 0
      %872 = vmatprep.subr.bf16.mxu0 0
      %873 = vmatpush1.bf16.msra.mxu0 %v854
      %874 = vmatprep.subr.bf16.mxu0 0
      %875 = vmatpush1.bf16.msra.mxu0 %v853
      %876 = vmatprep.subr.bf16.mxu0 0
      %877 = vmatpush2.bf16.msra.mxu0 0
      %878 = vmatprep.subr.bf16.mxu0 0
      %879 = vmatpush2.bf16.msra.mxu0 0
      %880 = vmatprep.subr.bf16.mxu0 0
      %881 = vmatpush2.bf16.msra.mxu0 0
      %882 = vmatprep.subr.bf16.mxu0 0
      %883 = vmatpush2.bf16.msra.mxu0 0
      %884 = vmatprep.subr.bf16.mxu0 0
      %885 = vmatpush2.bf16.msra.mxu0 0
      %886 = vmatprep.subr.bf16.mxu0 0
      %887 = vmatpush2.bf16.msra.mxu0 0
      %888 = vmatprep.subr.bf16.mxu0 0
      %889 = vmatpush2.bf16.msra.mxu0 0
      %890 = vmatprep.subr.bf16.mxu0 0
      %891 = vmatpush2.bf16.msra.mxu0 0
      %892 = vmatprep.mubr.bf16.mxu0 0
      %893 = vmatmul.mubr.bf16.gmra.mxu0 %v858
      %v894 = vpop.f32.mrf.mxu0
      %v895 = vadd.f32 0.0, %v894
      %v896 = vpop.f32.mrf.mxu0
      %v897 = vpop.f32.mrf.mxu0
      %v898 = vpop.f32.mrf.mxu0
      %899 = vdwg.mxu0
      %900 = vst [vmem:[%s273] sm:$0xff] %v895
      %p901 = scmp.lt.s32.totalorder %s18, 1
      %s902 = scalar_select %p901, %s18, 1
      %s903 = smul.addr %s902, 8
      %s904 = scalar_lea.vmem %s7, %s903
      // Predicated region
      $region49: #{fwd.1} parent=47 // pred_check
        %p905 = pneg %p188
      $region50: #{fwd.1} parent=47 // pred_check_branch
        %907 = sbr.rel (%p905) target = $region52
      $region51: #{fwd.1} parent=47 // pred_region
        _
      $region52: #{fwd.1} parent=47 // pred_fallthru
        _
    $region48: #{fwd.1} parent=5 // pred_fallthru
      _
    %p908 = scmp.le.s32.totalorder 2, %s13
    // Predicated region
    $region53: #{fwd.1} parent=5 // pred_check
      %p909 = pneg %p908
    $region54: #{fwd.1} parent=5 // pred_check_branch
      %911 = sbr.rel (%p909) target = $region56
    $region55: #{fwd.1} parent=5 // pred_region
      %s912 = ssub.s32 %s13, 2
      // Predicated region
      $region57: #{fwd.1} parent=55 // pred_check
        %p913 = pneg %p194
      $region58: #{fwd.1} parent=55 // pred_check_branch
        %915 = sbr.rel (%p913) target = $region60
      $region59: #{fwd.1} parent=55 // pred_region
        %p916 = scmp.lt.s32.totalorder %s19, 1
        %s917 = scalar_select %p916, %s19, 1
        %s918 = smul.addr %s917, 8
        %s919 = scalar_lea.vmem %s7, %s918
      $region60: #{fwd.1} parent=55 // pred_fallthru
        _
    $region56: #{fwd.1} parent=5 // pred_fallthru
      _
  $region6: #{fwd.1} parent=0 // loop_footer
    %s17 = sadd.s32 1, %s13
  $region7: #{fwd.1} parent=0 // loop_footer_branch
    %12 = sbr.rel target = $region3
  $region8: #{fwd.1} parent=0 // loop_exit
    _

</llo_original>
